<compile_context>
chip_gen: v6e
topology: v6e:2x2x1
jax: 0.10.0
libtpu: 0.0.40
codegen_flags: <defaults>
</compile_context>

<pallas_src>
import functools

import jax
import jax.numpy as jnp
from jax import lax
from jax.experimental import pallas as pl
from jax.experimental.pallas import tpu as pltpu

LANE = 128                               # vreg lane width
SUB = 8                                  # vreg sublane count (f32)
ACC_ROWS = 64                            # inner chunk: 8 f32 vregs per input
TILE_BYTES_PER_INPUT = 4 * 1024 * 1024   # per input per pipeline buffer
VMEM_LIMIT_BYTES = 40 * 1024 * 1024      # 2 in x 2 buf x 4 MiB = 16 MiB + headroom (< v7x 64 MiB)


def _num_tensorcores() -> int:
    """Best-effort TensorCores-per-chip (2 on v7x, 1 on v5e/v6e)."""
    try:
        info = pltpu.get_tpu_info()
        for name in ("num_cores", "core_count", "tensorcores_per_chip",
                     "num_tensorcores", "cores_per_chip"):
            v = getattr(info, name, None)
            if isinstance(v, int) and v >= 1:
                return min(int(v), 2)
    except Exception:
        pass
    # Safe fallback: the 2-way split is only engaged when the tile grid divides
    # evenly, so it never duplicates DMAs even on single-TensorCore chips.
    return 2


def _simse_partial_kernel(pred_ref, real_ref, out_ref, *,
                          tile_rows, tiles_per_split, num_tiles, rows):
    c = pl.program_id(0)          # core-split index ("parallel")
    i = pl.program_id(1)          # tile index within split ("arbitrary")

    @pl.when(i == 0)
    def _():
        out_ref[...] = jnp.zeros_like(out_ref)

    if tile_rows % ACC_ROWS != 0:
        # Tiny-input path (rows < 64): single full-extent tile, trivial work.
        diffs = (real_ref[...].astype(jnp.float32)
                 - pred_ref[...].astype(jnp.float32))
        if tile_rows % SUB == 0:
            out_ref[0] += diffs.reshape(tile_rows // SUB, SUB, LANE).sum(axis=0)
        else:
            col = jnp.sum(diffs, axis=0, keepdims=True)          # (1, LANE)
            sub = jax.lax.broadcasted_iota(jnp.int32, (SUB, LANE), 0)
            out_ref[0] += jnp.where(sub == 0,
                                    jnp.broadcast_to(col, (SUB, LANE)),
                                    jnp.float32(0.0))
        return

    n_chunks = tile_rows // ACC_ROWS
    if n_chunks % 4 == 0:
        unroll = 4
    elif n_chunks % 2 == 0:
        unroll = 2
    else:
        unroll = 1

    def fold_tile(masked):
        # Hoisted iota: built once, reused by every chunk (no per-iter broadcast).
        row_ids = jax.lax.broadcasted_iota(jnp.int32, (ACC_ROWS, LANE), 0)
        valid = rows - (num_tiles - 1) * tile_rows   # static Python int

        def body(k, acc):
            start = pl.multiple_of(k * ACC_ROWS, ACC_ROWS)
            d = (real_ref[pl.ds(start, ACC_ROWS), :].astype(jnp.float32)
                 - pred_ref[pl.ds(start, ACC_ROWS), :].astype(jnp.float32))
            if masked:
                # Rows past the logical end of the array hold unspecified VMEM
                # data; they are discarded by a *select* (not arithmetic), so
                # NaN/Inf garbage cannot propagate.  Scalar RHS -> 1 cmp + 1
                # select per vreg.
                d = jnp.where(row_ids < (valid - k * ACC_ROWS), d,
                              jnp.float32(0.0))
            return acc + d

        acc = lax.fori_loop(0, n_chunks, body,
                            jnp.zeros((ACC_ROWS, LANE), jnp.float32),
                            unroll=unroll)
        return acc.reshape(ACC_ROWS // SUB, SUB, LANE).sum(axis=0)

    ragged = (rows % tile_rows) != 0
    if ragged:
        g = c * tiles_per_split + i
        # Only the single last global tile extends past the array; every other
        # tile takes the fast unmasked path.

        @pl.when(g == num_tiles - 1)
        def _():
            out_ref[0] += fold_tile(masked=True)

        @pl.when(g != num_tiles - 1)
        def _():
            out_ref[0] += fold_tile(masked=False)
    else:
        out_ref[0] += fold_tile(masked=False)


def simse(pred, real, *, tile_rows_max=None):
    """(sum(real - pred))^2 / numel^2  — matches the PyTorch SIMSE forward."""
    assert pred.shape == real.shape, "pred/real must have the same shape"
    n = pred.size
    if n == 0:
        return jnp.float32(0.0)

    itemsize = jnp.dtype(pred.dtype).itemsize
    flat_p = pred.reshape(-1)
    flat_r = real.reshape(-1)

    rows = n // LANE
    tail = n - rows * LANE

    if rows == 0:
        # Fewer than 128 elements: a kernel launch is pure overhead.
        total = jnp.sum(flat_r.astype(jnp.float32) - flat_p.astype(jnp.float32))
    else:
        body_p = flat_p if tail == 0 else flat_p[: rows * LANE]
        body_r = flat_r if tail == 0 else flat_r[: rows * LANE]
        p2 = body_p.reshape(rows, LANE)
        r2 = body_r.reshape(rows, LANE)

        # --- static tiling decisions ------------------------------------
        if tile_rows_max is None:
            tile_rows_max = TILE_BYTES_PER_INPUT // (LANE * itemsize)
        tile_rows_max = max(ACC_ROWS, (tile_rows_max // ACC_ROWS) * ACC_ROWS)

        if rows >= ACC_ROWS:
            # Multiple of 64 -> legal packed-sublane layout for f32/bf16/int8
            # and the in-kernel 64-row chunk loop divides evenly.
            tile_rows = min(tile_rows_max, (rows // ACC_ROWS) * ACC_ROWS)
        else:
            tile_rows = rows          # tiny input: full-extent block

        num_tiles = (rows + tile_rows - 1) // tile_rows
        # 2-way leading split (both TensorCores on v7x), engaged only when the
        # tile grid divides evenly: no clamped/duplicated tile DMAs, ever.
        num_splits = 2 if (_num_tensorcores() >= 2 and num_tiles >= 2
                           and num_tiles % 2 == 0) else 1
        tiles_per_split = num_tiles // num_splits

        kernel = functools.partial(
            _simse_partial_kernel,
            tile_rows=tile_rows,
            tiles_per_split=tiles_per_split,
            num_tiles=num_tiles,
            rows=rows)

        def in_index_map(c, i):
            return (c * tiles_per_split + i, 0)

        partials = pl.pallas_call(
            kernel,
            out_shape=jax.ShapeDtypeStruct((num_splits, SUB, LANE), jnp.float32),
            grid_spec=pltpu.PrefetchScalarGridSpec(
                num_scalar_prefetch=0,
                grid=(num_splits, tiles_per_split),
                in_specs=[
                    pl.BlockSpec((tile_rows, LANE), in_index_map),
                    pl.BlockSpec((tile_rows, LANE), in_index_map),
                ],
                out_specs=pl.BlockSpec((1, SUB, LANE), lambda c, i: (c, 0, 0)),
            ),
            compiler_params=pltpu.CompilerParams(
                dimension_semantics=("parallel", "arbitrary"),
                vmem_limit_bytes=VMEM_LIMIT_BYTES,
            ),
            cost_estimate=pl.CostEstimate(
                flops=2 * rows * LANE,
                transcendentals=0,
                bytes_accessed=(2 * rows * LANE * itemsize
                                + num_splits * SUB * LANE * 4),
            ),
        )(p2, r2)

        total = jnp.sum(partials)
        if tail:
            # <128-element ragged tail: tiny jnp reduce (replaces the old
            # full-array jnp.pad copies of BOTH inputs).
            total = total + jnp.sum(flat_r[rows * LANE:].astype(jnp.float32)
                                    - flat_p[rows * LANE:].astype(jnp.float32))

    # (sum / n)^2 == sum^2 / n^2, with better f32 dynamic range; n stays a
    # Python float so huge numel^2 never hits int32 argument parsing.
    mean = total * jnp.float32(1.0 / float(n))
    return mean * mean


def _ref_simse(pred, real):
    s = jnp.sum(real.astype(jnp.float32) - pred.astype(jnp.float32))
    return (s / jnp.float32(float(pred.size))) ** 2


if __name__ == "__main__":
    key = jax.random.PRNGKey(0)
    kp, kr = jax.random.split(key)

    # 1) Small NCHW case (single small tile).
    shape = (2, 4, 16, 16)
    pred = jax.random.normal(kp, shape, dtype=jnp.float32)
    real = jax.random.normal(kr, shape, dtype=jnp.float32)
    result = simse(pred, real)
    jax.block_until_ready(result)
    ref = _ref_simse(pred, real)
    assert jnp.allclose(result, ref, rtol=1e-3, atol=1e-9), (result, ref)

    # 2) Multi-tile + 2-way split + ragged last-tile mask
    #    (rows = 1536, forced tile of 1024 rows -> 2 tiles, second one ragged).
    kp2, kr2 = jax.random.split(jax.random.PRNGKey(1))
    shape2 = (2, 8, 96, 128)
    pred2 = jax.random.normal(kp2, shape2, dtype=jnp.float32)
    real2 = jax.random.normal(kr2, shape2, dtype=jnp.float32)
    result2 = simse(pred2, real2, tile_rows_max=1024)
    jax.block_until_ready(result2)
    ref2 = _ref_simse(pred2, real2)
    assert jnp.allclose(result2, ref2, rtol=2e-3, atol=1e-8), (result2, ref2)

    # 2b) Same data, odd tile count (3 tiles of 512 rows): split disabled,
    #     exercises accumulation across the "arbitrary" axis, no mask.
    result2b = simse(pred2, real2, tile_rows_max=512)
    jax.block_until_ready(result2b)
    assert jnp.allclose(result2b, ref2, rtol=2e-3, atol=1e-8), (result2b, ref2)

    # 3) numel not a multiple of 128 (rows = 5, 15-element tail handled in the
    #    wrapper, no jnp.pad of the inputs).
    kp3, kr3 = jax.random.split(jax.random.PRNGKey(2))
    shape3 = (5, 131)
    pred3 = jax.random.normal(kp3, shape3, dtype=jnp.float32)
    real3 = jax.random.normal(kr3, shape3, dtype=jnp.float32)
    result3 = simse(pred3, real3)
    jax.block_until_ready(result3)
    ref3 = _ref_simse(pred3, real3)
    assert jnp.allclose(result3, ref3, rtol=1e-3, atol=1e-9), (result3, ref3)

    # 4) Fewer than 128 elements: pure-JAX fallback (kernel launch is overhead).
    pred4 = jax.random.normal(jax.random.PRNGKey(3), (7,), dtype=jnp.float32)
    real4 = jax.random.normal(jax.random.PRNGKey(4), (7,), dtype=jnp.float32)
    result4 = simse(pred4, real4)
    jax.block_until_ready(result4)
    ref4 = _ref_simse(pred4, real4)
    assert jnp.allclose(result4, ref4, rtol=1e-3, atol=1e-9), (result4, ref4)

    print("KERNEL_OK")
</pallas_src>

<mosaic_0001>
module attributes {stable_mosaic.version = 11 : i64} {
  func.func @_simse_partial_kernel(%arg0: i32, %arg1: i32, %arg2: memref<16x128xf32, #tpu.memory_space<vmem>>, %arg3: memref<16x128xf32, #tpu.memory_space<vmem>>, %arg4: memref<1x8x128xf32, #tpu.memory_space<vmem>>) attributes {dimension_semantics = [#tpu.dimension_semantics<parallel>, #tpu.dimension_semantics<arbitrary>], iteration_bounds = array<i64: 1, 1>, scalar_prefetch = 0 : i64, scratch_operands = 0 : i64, tpu.core_type = #tpu.core_type<tc>, window_params = [{transform_indices = @transform_0, window_bounds = array<i64: 16, 128>}, {transform_indices = @transform_1, window_bounds = array<i64: 16, 128>}, {transform_indices = @transform_2, window_bounds = array<i64: 1, 8, 128>}]} {
    %c0_i32 = arith.constant 0 : i32
    %0 = arith.cmpi eq, %arg1, %c0_i32 : i32
    %1 = arith.extui %0 : i1 to i32
    %c0_i32_0 = arith.constant 0 : i32
    %2 = arith.cmpi ne, %1, %c0_i32_0 : i32
    scf.if %2 {
      %cst_10 = arith.constant 0.000000e+00 : f32
      %14 = vector.broadcast %cst_10 : f32 to vector<1x8x128xf32>
      %c0_11 = arith.constant 0 : index
      %c0_12 = arith.constant 0 : index
      %c0_13 = arith.constant 0 : index
      %15 = vector.load %arg4[%c0_11, %c0_12, %c0_13] : memref<1x8x128xf32, #tpu.memory_space<vmem>>, vector<1x8x128xf32>
      tpu.vector_store %arg4[%c0_11, %c0_12, %c0_13], %14 {strides = array<i32>} : memref<1x8x128xf32, #tpu.memory_space<vmem>>, vector<1x8x128xf32>,
    } else {
    }
    %c0 = arith.constant 0 : index
    %c0_1 = arith.constant 0 : index
    %3 = vector.load %arg3[%c0, %c0_1] : memref<16x128xf32, #tpu.memory_space<vmem>>, vector<16x128xf32>
    %c0_2 = arith.constant 0 : index
    %c0_3 = arith.constant 0 : index
    %4 = vector.load %arg2[%c0_2, %c0_3] : memref<16x128xf32, #tpu.memory_space<vmem>>, vector<16x128xf32>
    %5 = arith.subf %3, %4 : vector<16x128xf32>
    %c0_4 = arith.constant 0 : index
    %c0_5 = arith.constant 0 : index
    %c0_6 = arith.constant 0 : index
    %6 = vector.load %arg4[%c0_4, %c0_5, %c0_6] : memref<1x8x128xf32, #tpu.memory_space<vmem>>, vector<1x8x128xf32>
    %7 = vector.shape_cast %6 : vector<1x8x128xf32> to vector<8x128xf32>
    %8 = vector.shape_cast %5 : vector<16x128xf32> to vector<2x8x128xf32>
    %cst = arith.constant dense<0.000000e+00> : vector<8x128xf32>
    %9 = vector.multi_reduction <add>, %8, %cst [0] : vector<2x8x128xf32> to vector<8x128xf32>
    %10 = arith.addf %7, %9 : vector<8x128xf32>
    %c0_7 = arith.constant 0 : index
    %c0_8 = arith.constant 0 : index
    %c0_9 = arith.constant 0 : index
    %11 = vector.load %arg4[%c0_7, %c0_8, %c0_9] : memref<1x8x128xf32, #tpu.memory_space<vmem>>, vector<1x8x128xf32>
    %12 = vector.shape_cast %11 : vector<1x8x128xf32> to vector<8x128xf32>
    %13 = vector.shape_cast %10 : vector<8x128xf32> to vector<1x8x128xf32>
    tpu.vector_store %arg4[%c0_7, %c0_8, %c0_9], %13 {strides = array<i32>} : memref<1x8x128xf32, #tpu.memory_space<vmem>>, vector<1x8x128xf32>,
    return
  }
  func.func @transform_0(%arg0: i32, %arg1: i32) -> (i32, i32) {
    %c1_i32 = arith.constant 1 : i32
    %0 = arith.muli %arg0, %c1_i32 : i32
    %1 = arith.addi %0, %arg1 : i32
    %c0_i32 = arith.constant 0 : i32
    %c0_i32_0 = arith.constant 0 : i32
    return %1, %c0_i32 : i32, i32
  }
  func.func @transform_1(%arg0: i32, %arg1: i32) -> (i32, i32) {
    %c1_i32 = arith.constant 1 : i32
    %0 = arith.muli %arg0, %c1_i32 : i32
    %1 = arith.addi %0, %arg1 : i32
    %c0_i32 = arith.constant 0 : i32
    %c0_i32_0 = arith.constant 0 : i32
    return %1, %c0_i32 : i32, i32
  }
  func.func @transform_2(%arg0: i32, %arg1: i32) -> (i32, i32, i32) {
    %c0_i32 = arith.constant 0 : i32
    %c0_i32_0 = arith.constant 0 : i32
    %c0_i32_1 = arith.constant 0 : i32
    return %arg0, %c0_i32, %c0_i32_0 : i32, i32, i32
  }
}

</mosaic_0001>

<llo_original>
// kernel: tpu_custom_call.1
$region0: #{tpu_custom_call.1}
  #allocation0 [shape = 'u32[]', space=smem, size = 0x4, offset = 0x4, fixed_abs, tag = 'smem constant byte address 0x4 - core index']
  #allocation1 [shape = 'u32[144,128]{1,0:T(1,128)}', space=vmem, size = 0x12000, scoped, tag = 'internal scratch']
  %s0 = inlined_call_operand.hbm [shape: f32[16,128], index: 0, kind: input, shape index: {}]
  %s1 = inlined_call_operand.hbm [shape: f32[16,128], index: 1, kind: input, shape index: {}]
  %s2 = inlined_call_operand.hbm [shape: f32[1,8,128], index: 2, kind: output, shape index: {}]
  %s3 = sld [smem:[#allocation0]]
  $region30: #{tpu_custom_call.1} parent=0
    _
  %s5 = ssub.s32 1, %s3
  %s6 = scalar_select 0, %s5, %s3
  $region1: #{tpu_custom_call.1} parent=0
    #allocation2 [shape = 'u8[8192]{0}', space=vmem, size = 0x2000, scoped, tag = 'input window, operand 0, single buffered']
    #allocation3 [shape = 's32[1]{0}', space=sflag, size = 0x4, scoped, tag = 'scoped memory for tpu_custom_call.1']
    #allocation4 [shape = 's32[1]{0}', space=sflag, size = 0x4, scoped, tag = 'scoped memory for tpu_custom_call.1']
    #allocation5 [shape = 'u8[8192]{0}', space=vmem, size = 0x2000, scoped, tag = 'input window, operand 1, single buffered']
    #allocation6 [shape = 's32[1]{0}', space=sflag, size = 0x4, scoped, tag = 'scoped memory for tpu_custom_call.1']
    #allocation7 [shape = 'u8[4096]{0}', space=vmem, size = 0x1000, scoped, tag = 'output window, operand 0, single buffered']
    %7 = vsyncpa [#allocation3], 0
    %8 = vsyncpa [#allocation6], 0
    %9 = vsyncpa [#allocation4], 0
    // Predicated region
    $region2: #{tpu_custom_call.1} parent=1 // pred_check
      _
    $region3: #{tpu_custom_call.1} parent=1 // pred_check_branch
      %11 = sbr.rel (0) target = $region5
    $region4: #{tpu_custom_call.1} parent=1 // pred_region
      %s12 = sadd.s32 0, 0
      %s13 = smul.u32 2, %s12
      %s15 = ssub.s32 256, 256
      %16 = vsyncadd [#allocation3], %s15
      %s17 = smul.addr %s13, 128
      %s18 = scalar_lea.hbm %s0, %s17
      %s19 = sshll.u32 [#allocation2], 4
      %s20 = int_to_ptr.vmem [resolvable:$true] %s19
      %25 = dma.hbm_to_vmem [thread:$0]  %s18, 256, %s20, [#allocation3], 128, 128, 8
    $region5: #{tpu_custom_call.1} parent=1 // pred_fallthru
      _
    // Predicated region
    $region6: #{tpu_custom_call.1} parent=1 // pred_check
      _
    $region7: #{tpu_custom_call.1} parent=1 // pred_check_branch
      %27 = sbr.rel (0) target = $region9
    $region8: #{tpu_custom_call.1} parent=1 // pred_region
      %s28 = sadd.s32 0, 0
      %s29 = smul.u32 2, %s28
      %s31 = ssub.s32 256, 256
      %32 = vsyncadd [#allocation6], %s31
      %s33 = smul.addr %s29, 128
      %s34 = scalar_lea.hbm %s1, %s33
      %s35 = sshll.u32 [#allocation5], 4
      %s36 = int_to_ptr.vmem [resolvable:$true] %s35
      %41 = dma.hbm_to_vmem [thread:$0]  %s34, 256, %s36, [#allocation6], 128, 128, 8
    $region9: #{tpu_custom_call.1} parent=1 // pred_fallthru
      _
    // Predicated region
    $region10: #{tpu_custom_call.1} parent=1 // pred_check
      _
    $region11: #{tpu_custom_call.1} parent=1 // pred_check_branch
      %43 = sbr.rel (0) target = $region13
    $region12: #{tpu_custom_call.1} parent=1 // pred_region
      %44 = dma.done [#allocation3], 256
    $region13: #{tpu_custom_call.1} parent=1 // pred_fallthru
      _
    // Predicated region
    $region14: #{tpu_custom_call.1} parent=1 // pred_check
      _
    $region15: #{tpu_custom_call.1} parent=1 // pred_check_branch
      %46 = sbr.rel (0) target = $region17
    $region16: #{tpu_custom_call.1} parent=1 // pred_region
      %47 = dma.done [#allocation6], 256
    $region17: #{tpu_custom_call.1} parent=1 // pred_fallthru
      _
    %s48 = sadd.s32 0, 0
    %s49 = smul.u32 2, %s48
    %s50 = sadd.s32 0, 0
    %s51 = smul.u32 2, %s50
    %p52 = scmp.eq.s32.totalorder 0, 0
    // Predicated region
    $region18: #{tpu_custom_call.1} parent=1 // pred_check
      %p53 = pneg %p52
    $region19: #{tpu_custom_call.1} parent=1 // pred_check_branch
      %55 = sbr.rel (%p53) target = $region21
    $region20: #{tpu_custom_call.1} parent=1 // pred_region
      %56 = vst [vmem:[#allocation7] sm:$0xff] 0.0
    $region21: #{tpu_custom_call.1} parent=1 // pred_fallthru
      _
    %v57 = vld [vmem:[#allocation5] sm:$0xff]
    %v58 = vld [vmem:[#allocation5 + $0x8] sm:$0xff]
    %v59 = vld [vmem:[#allocation2] sm:$0xff]
    %v60 = vld [vmem:[#allocation2 + $0x8] sm:$0xff]
    %v61 = vsub.f32 %v57, %v59
    %v62 = vsub.f32 %v58, %v60
    %v63 = vld [vmem:[#allocation7] sm:$0xff]
    %v64 = vadd.f32 %v61, %v62
    %v65 = vadd.f32 %v63, %v64
    %66 = vst [vmem:[#allocation7] sm:$0xff] %v65
    // Predicated region
    $region22: #{tpu_custom_call.1} parent=1 // pred_check
      _
    $region23: #{tpu_custom_call.1} parent=1 // pred_check_branch
      %68 = sbr.rel (0) target = $region25
    $region24: #{tpu_custom_call.1} parent=1 // pred_region
      %s70 = ssub.s32 128, 128
      %71 = vsyncadd [#allocation4], %s70
      %s73 = sshll.u32 [#allocation7], 4
      %s74 = int_to_ptr.vmem [resolvable:$true] %s73
      %76 = dma.vmem_to_hbm [thread:$0]  %s74, 128, %s2, [#allocation4]
    $region25: #{tpu_custom_call.1} parent=1 // pred_fallthru
      _
    // Predicated region
    $region26: #{tpu_custom_call.1} parent=1 // pred_check
      _
    $region27: #{tpu_custom_call.1} parent=1 // pred_check_branch
      %78 = sbr.rel (0) target = $region29
    $region28: #{tpu_custom_call.1} parent=1 // pred_region
      %79 = dma.done [#allocation4], 128
    $region29: #{tpu_custom_call.1} parent=1 // pred_fallthru
      _
    %80 = vsyncpa [#allocation3], 1
    %81 = vsyncpa [#allocation6], 1
    %82 = vsyncpa [#allocation4], 1

</llo_original>
